<compile_context>
chip_gen: v5e
topology: v5e:2x2
jax: 0.10.0
libtpu: 0.0.40
codegen_flags: <defaults>
</compile_context>

<pallas_src>
import jax
import jax.numpy as jnp
from jax.experimental import pallas as pl
from jax.experimental.pallas import tpu as pltpu

OUT_LANES = 128                 # lane-dense output block width
_MXU_DTYPE = jnp.bfloat16       # MXU operand dtype (f32 accumulation)


def _ffnn_score_kernel(g_ref, w1_ref, b1_ref, w2_ref, b2_ref, w3_ref, b3_ref,
                       out_ref):
    # fc1: bf16 MXU matmul, f32 accumulation; bias + ReLU on the VPU in f32.
    h1 = jnp.dot(g_ref[...], w1_ref[...], preferred_element_type=jnp.float32)
    h1 = jnp.maximum(h1 + b1_ref[...], 0.0)
    # dropout(p=0.2): identity at inference time.
    # fc2: cast the activation to bf16 only at the MXU operand.
    h2 = jnp.dot(h1.astype(_MXU_DTYPE), w2_ref[...],
                 preferred_element_type=jnp.float32)
    h2 = jnp.maximum(h2 + b2_ref[...], 0.0)
    # fc3 (output width 1): VPU multiply + lane reduction instead of a
    # width-1 MXU matmul (which would use 1 of 128/256 result columns).
    s = jnp.sum(h2 * w3_ref[...], axis=-1, keepdims=True) + b3_ref[...]
    # Lane-dense store: replicate the score column across 128 lanes so the
    # store is a full-width unmasked vst; the wrapper slices lane 0.
    out_ref[...] = jnp.broadcast_to(s, out_ref.shape).astype(out_ref.dtype)


def _prepare_params(params, hidden_pad):
    """Zero-pad hidden -> hidden_pad and cast MXU operands to bf16 (math unchanged)."""
    w1, b1, w2, b2, w3, b3 = params
    hidden = w1.shape[1]
    ph = hidden_pad - hidden
    w1p = jnp.pad(w1, ((0, 0), (0, ph))).astype(_MXU_DTYPE)
    b1p = jnp.pad(b1.reshape(1, -1), ((0, 0), (0, ph))).astype(jnp.float32)
    w2p = jnp.pad(w2, ((0, ph), (0, ph))).astype(_MXU_DTYPE)
    b2p = jnp.pad(b2.reshape(1, -1), ((0, 0), (0, ph))).astype(jnp.float32)
    # fc3 weight as a padded f32 row (VPU path, not MXU).
    w3p = jnp.pad(w3.reshape(1, -1), ((0, 0), (0, ph))).astype(jnp.float32)
    b3p = b3.reshape(1, 1).astype(jnp.float32)
    return w1p, b1p, w2p, b2p, w3p, b3p


def _vmem_bytes(tile_m, in_size, hidden_pad):
    """Rough per-step VMEM footprint (double-buffered I/O + weights + temps)."""
    g_tile = 2 * tile_m * in_size * 2                           # bf16 input tile
    weights = 2 * ((in_size + hidden_pad) * hidden_pad * 2      # W1 + W2 (bf16)
                   + (3 * hidden_pad + 1) * 4)                  # b1, b2, w3 row, b3
    out_tile = 2 * tile_m * OUT_LANES * 4                       # f32 output tile
    scratch = 4 * tile_m * hidden_pad * 4                       # h1/h2/temps headroom
    return g_tile + weights + out_tile + scratch


def ffnn_forward(g_i, params, *, max_tile_m=512):
    """FFNN forward (out_size == 1): g_i [N, in_size] -> scores [N, 1]."""
    n, in_size = g_i.shape
    hidden = params[0].shape[1]
    assert params[4].shape[1] == 1, "kernel is specialized for out_size == 1"
    hidden_pad = pl.cdiv(hidden, 128) * 128

    w1p, b1p, w2p, b2p, w3p, b3p = _prepare_params(params, hidden_pad)

    # Tile selection: as many rows per grid step as the VMEM budget allows
    # (<= max_tile_m); small N collapses to a single grid step.
    n8 = pl.cdiv(n, 8) * 8
    tile_m = min(max_tile_m, n8)
    while tile_m > 8 and _vmem_bytes(tile_m, in_size, hidden_pad) > 20 * 2**20:
        tile_m = max(8, ((tile_m // 2) + 7) // 8 * 8)
    n_pad = pl.cdiv(n, tile_m) * tile_m

    g = g_i
    if n_pad != n:
        g = jnp.pad(g, ((0, n_pad - n), (0, 0)))
    g = g.astype(_MXU_DTYPE)

    grid = (n_pad // tile_m,)
    vmem_limit = int(min(max(2 * _vmem_bytes(tile_m, in_size, hidden_pad),
                             32 * 2**20), 48 * 2**20))

    out = pl.pallas_call(
        _ffnn_score_kernel,
        out_shape=jax.ShapeDtypeStruct((n_pad, OUT_LANES), jnp.float32),
        grid_spec=pltpu.PrefetchScalarGridSpec(
            num_scalar_prefetch=0,
            grid=grid,
            in_specs=[
                pl.BlockSpec((tile_m, in_size), lambda i: (i, 0)),        # g tile
                # Constant index_maps -> fetched once, not per grid step.
                pl.BlockSpec((in_size, hidden_pad), lambda i: (0, 0)),    # W1
                pl.BlockSpec((1, hidden_pad), lambda i: (0, 0)),          # b1
                pl.BlockSpec((hidden_pad, hidden_pad), lambda i: (0, 0)), # W2
                pl.BlockSpec((1, hidden_pad), lambda i: (0, 0)),          # b2
                pl.BlockSpec((1, hidden_pad), lambda i: (0, 0)),          # w3 row
                pl.BlockSpec((1, 1), lambda i: (0, 0)),                   # b3
            ],
            out_specs=pl.BlockSpec((tile_m, OUT_LANES), lambda i: (i, 0)),
        ),
        compiler_params=pltpu.CompilerParams(
            dimension_semantics=("parallel",),
            vmem_limit_bytes=vmem_limit,
        ),
    )(g, w1p, b1p, w2p, b2p, w3p, b3p)

    return out[:n, :1]   # scores live in lane 0; padded rows are dropped


def init_params(key, in_size, hidden=150, out_size=1):
    """Synthetic parameters in transposed nn.Linear layout: y = x @ W + b."""
    ks = jax.random.split(key, 6)
    s1 = 1.0 / jnp.sqrt(in_size)
    s2 = 1.0 / jnp.sqrt(hidden)
    w1 = jax.random.uniform(ks[0], (in_size, hidden), jnp.float32, -s1, s1)
    b1 = jax.random.uniform(ks[1], (hidden,), jnp.float32, -s1, s1)
    w2 = jax.random.uniform(ks[2], (hidden, hidden), jnp.float32, -s2, s2)
    b2 = jax.random.uniform(ks[3], (hidden,), jnp.float32, -s2, s2)
    w3 = jax.random.uniform(ks[4], (hidden, out_size), jnp.float32, -s2, s2)
    b3 = jax.random.uniform(ks[5], (out_size,), jnp.float32, -s2, s2)
    return (w1, b1, w2, b2, w3, b3)


def _reference(g_i, params):
    """Reference that mirrors the kernel's bf16-operand / f32-accumulate path."""
    w1, b1, w2, b2, w3, b3 = params
    f32, bf16 = jnp.float32, jnp.bfloat16
    g = g_i.astype(bf16).astype(f32)
    h1 = jnp.maximum(g @ w1.astype(bf16).astype(f32) + b1, 0.0)
    h1 = h1.astype(bf16).astype(f32)
    h2 = jnp.maximum(h1 @ w2.astype(bf16).astype(f32) + b2, 0.0)
    return jnp.sum(h2 * w3[:, 0][None, :], axis=-1, keepdims=True) + b3


if __name__ == "__main__":
    key = jax.random.PRNGKey(0)
    k_g, k_p = jax.random.split(key)

    # Small demo shapes: 16 candidate spans, dim-32 span representations.
    n_spans, in_size = 16, 32
    g_i = jax.random.normal(k_g, (n_spans, in_size), dtype=jnp.float32)
    params = init_params(k_p, in_size)

    s_m = ffnn_forward(g_i, params)          # [N, 1]
    s_m = jax.block_until_ready(s_m)

    ref = _reference(g_i, params)
    assert s_m.shape == (n_spans, 1)
    assert jnp.allclose(s_m, ref, atol=2e-3, rtol=2e-2), "mismatch vs reference"

    # TODO(synk): nn.Dropout(p=0.2) is identity here (inference mode);
    # training-mode stochastic masking would need pltpu.prng_* and is omitted.
    print("KERNEL_OK")
</pallas_src>

<mosaic_0001>
module attributes {stable_mosaic.version = 11 : i64} {
  func.func @_ffnn_score_kernel(%arg0: i32, %arg1: memref<16x32xbf16, #tpu.memory_space<vmem>>, %arg2: memref<32x256xbf16, #tpu.memory_space<vmem>>, %arg3: memref<1x256xf32, #tpu.memory_space<vmem>>, %arg4: memref<256x256xbf16, #tpu.memory_space<vmem>>, %arg5: memref<1x256xf32, #tpu.memory_space<vmem>>, %arg6: memref<1x256xf32, #tpu.memory_space<vmem>>, %arg7: memref<1x1xf32, #tpu.memory_space<vmem>>, %arg8: memref<16x128xf32, #tpu.memory_space<vmem>>) attributes {dimension_semantics = [#tpu.dimension_semantics<parallel>], iteration_bounds = array<i64: 1>, scalar_prefetch = 0 : i64, scratch_operands = 0 : i64, tpu.core_type = #tpu.core_type<tc>, window_params = [{transform_indices = @transform_0, window_bounds = array<i64: 16, 32>}, {pipeline_mode = #tpu.pipeline_mode<synchronous>, transform_indices = @transform_1, window_bounds = array<i64: 32, 256>}, {pipeline_mode = #tpu.pipeline_mode<synchronous>, transform_indices = @transform_2, window_bounds = array<i64: 1, 256>}, {pipeline_mode = #tpu.pipeline_mode<synchronous>, transform_indices = @transform_3, window_bounds = array<i64: 256, 256>}, {pipeline_mode = #tpu.pipeline_mode<synchronous>, transform_indices = @transform_4, window_bounds = array<i64: 1, 256>}, {pipeline_mode = #tpu.pipeline_mode<synchronous>, transform_indices = @transform_5, window_bounds = array<i64: 1, 256>}, {pipeline_mode = #tpu.pipeline_mode<synchronous>, transform_indices = @transform_6, window_bounds = array<i64: 1, 1>}, {transform_indices = @transform_7, window_bounds = array<i64: 16, 128>}]} {
    %c0 = arith.constant 0 : index
    %c0_0 = arith.constant 0 : index
    %0 = vector.load %arg1[%c0, %c0_0] : memref<16x32xbf16, #tpu.memory_space<vmem>>, vector<16x32xbf16>
    %c0_1 = arith.constant 0 : index
    %c0_2 = arith.constant 0 : index
    %1 = vector.load %arg2[%c0_1, %c0_2] : memref<32x256xbf16, #tpu.memory_space<vmem>>, vector<32x256xbf16>
    %cst = arith.constant dense<0.000000e+00> : vector<16x256xf32>
    %2 = tpu.matmul %0, %1, %cst {dimension_numbers = #tpu.dot_dimension_numbers<[1], [0], [0], [1], [0, 0, 1, 1], [], []>} : vector<16x32xbf16>, vector<32x256xbf16>, vector<16x256xf32> -> vector<16x256xf32>
    %c0_3 = arith.constant 0 : index
    %c0_4 = arith.constant 0 : index
    %3 = vector.load %arg3[%c0_3, %c0_4] : memref<1x256xf32, #tpu.memory_space<vmem>>, vector<1x256xf32>
    %4 = vector.broadcast %3 : vector<1x256xf32> to vector<16x256xf32>
    %5 = arith.addf %2, %4 : vector<16x256xf32>
    %cst_5 = arith.constant 0.000000e+00 : f32
    %6 = vector.broadcast %cst_5 : f32 to vector<16x256xf32>
    %7 = arith.maximumf %5, %6 : vector<16x256xf32>
    %8 = arith.truncf %7 : vector<16x256xf32> to vector<16x256xbf16>
    %c0_6 = arith.constant 0 : index
    %c0_7 = arith.constant 0 : index
    %9 = vector.load %arg4[%c0_6, %c0_7] : memref<256x256xbf16, #tpu.memory_space<vmem>>, vector<256x256xbf16>
    %cst_8 = arith.constant dense<0.000000e+00> : vector<16x256xf32>
    %10 = tpu.matmul %8, %9, %cst_8 {dimension_numbers = #tpu.dot_dimension_numbers<[1], [0], [0], [1], [0, 0, 1, 1], [], []>} : vector<16x256xbf16>, vector<256x256xbf16>, vector<16x256xf32> -> vector<16x256xf32>
    %c0_9 = arith.constant 0 : index
    %c0_10 = arith.constant 0 : index
    %11 = vector.load %arg5[%c0_9, %c0_10] : memref<1x256xf32, #tpu.memory_space<vmem>>, vector<1x256xf32>
    %12 = vector.broadcast %11 : vector<1x256xf32> to vector<16x256xf32>
    %13 = arith.addf %10, %12 : vector<16x256xf32>
    %cst_11 = arith.constant 0.000000e+00 : f32
    %14 = vector.broadcast %cst_11 : f32 to vector<16x256xf32>
    %15 = arith.maximumf %13, %14 : vector<16x256xf32>
    %c0_12 = arith.constant 0 : index
    %c0_13 = arith.constant 0 : index
    %16 = vector.load %arg6[%c0_12, %c0_13] : memref<1x256xf32, #tpu.memory_space<vmem>>, vector<1x256xf32>
    %17 = vector.broadcast %16 : vector<1x256xf32> to vector<16x256xf32>
    %18 = arith.mulf %15, %17 : vector<16x256xf32>
    %cst_14 = arith.constant dense<0.000000e+00> : vector<16xf32>
    %19 = vector.multi_reduction <add>, %18, %cst_14 [1] : vector<16x256xf32> to vector<16xf32>
    %20 = vector.shape_cast %19 : vector<16xf32> to vector<16x1xf32>
    %c0_15 = arith.constant 0 : index
    %c0_16 = arith.constant 0 : index
    %21 = vector.load %arg7[%c0_15, %c0_16] : memref<1x1xf32, #tpu.memory_space<vmem>>, vector<1x1xf32>
    %22 = vector.broadcast %21 : vector<1x1xf32> to vector<16x1xf32>
    %23 = arith.addf %20, %22 : vector<16x1xf32>
    %24 = vector.shape_cast %23 : vector<16x1xf32> to vector<16x1xf32>
    %25 = vector.broadcast %24 : vector<16x1xf32> to vector<16x128xf32>
    %c0_17 = arith.constant 0 : index
    %c0_18 = arith.constant 0 : index
    %26 = vector.load %arg8[%c0_17, %c0_18] : memref<16x128xf32, #tpu.memory_space<vmem>>, vector<16x128xf32>
    tpu.vector_store %arg8[%c0_17, %c0_18], %25 {strides = array<i32>} : memref<16x128xf32, #tpu.memory_space<vmem>>, vector<16x128xf32>,
    return
  }
  func.func @transform_0(%arg0: i32) -> (i32, i32) {
    %c0_i32 = arith.constant 0 : i32
    %c0_i32_0 = arith.constant 0 : i32
    return %arg0, %c0_i32 : i32, i32
  }
  func.func @transform_1(%arg0: i32) -> (i32, i32) {
    %c0_i32 = arith.constant 0 : i32
    %c0_i32_0 = arith.constant 0 : i32
    %c0_i32_1 = arith.constant 0 : i32
    return %c0_i32, %c0_i32_0 : i32, i32
  }
  func.func @transform_2(%arg0: i32) -> (i32, i32) {
    %c0_i32 = arith.constant 0 : i32
    %c0_i32_0 = arith.constant 0 : i32
    %c0_i32_1 = arith.constant 0 : i32
    return %c0_i32, %c0_i32_0 : i32, i32
  }
  func.func @transform_3(%arg0: i32) -> (i32, i32) {
    %c0_i32 = arith.constant 0 : i32
    %c0_i32_0 = arith.constant 0 : i32
    %c0_i32_1 = arith.constant 0 : i32
    return %c0_i32, %c0_i32_0 : i32, i32
  }
  func.func @transform_4(%arg0: i32) -> (i32, i32) {
    %c0_i32 = arith.constant 0 : i32
    %c0_i32_0 = arith.constant 0 : i32
    %c0_i32_1 = arith.constant 0 : i32
    return %c0_i32, %c0_i32_0 : i32, i32
  }
  func.func @transform_5(%arg0: i32) -> (i32, i32) {
    %c0_i32 = arith.constant 0 : i32
    %c0_i32_0 = arith.constant 0 : i32
    %c0_i32_1 = arith.constant 0 : i32
    return %c0_i32, %c0_i32_0 : i32, i32
  }
  func.func @transform_6(%arg0: i32) -> (i32, i32) {
    %c0_i32 = arith.constant 0 : i32
    %c0_i32_0 = arith.constant 0 : i32
    %c0_i32_1 = arith.constant 0 : i32
    return %c0_i32, %c0_i32_0 : i32, i32
  }
  func.func @transform_7(%arg0: i32) -> (i32, i32) {
    %c0_i32 = arith.constant 0 : i32
    %c0_i32_0 = arith.constant 0 : i32
    return %arg0, %c0_i32 : i32, i32
  }
}

</mosaic_0001>

<llo_original>
// kernel: tpu_custom_call.1
$region0: #{tpu_custom_call.1}
  #allocation0 [shape = 'u32[]', space=smem, size = 0x4, offset = 0x4, fixed_abs, tag = 'smem constant byte address 0x4 - core index']
  #allocation1 [shape = 'u32[72,128]{1,0:T(1,128)}', space=vmem, size = 0x9000, scoped, tag = 'internal scratch']
  #allocation2 [shape = 'f32[1,1]{1,0:T(1,128)S(1)}', space=vmem, size = 0x200, scoped, tag = 'scoped memory for tpu_custom_call.1']
  %s0 = inlined_call_operand.hbm [shape: bf16[16,32], index: 0, kind: input, shape index: {}]
  %s1 = inlined_call_operand.hbm [shape: bf16[32,256], index: 1, kind: input, shape index: {}]
  %s2 = inlined_call_operand.vmem [shape: f32[1,256], index: 2, kind: input, shape index: {}]
  %s3 = inlined_call_operand.hbm [shape: bf16[256,256], index: 3, kind: input, shape index: {}]
  %s4 = inlined_call_operand.vmem [shape: f32[1,256], index: 4, kind: input, shape index: {}]
  %s5 = inlined_call_operand.vmem [shape: f32[1,256], index: 5, kind: input, shape index: {}]
  %s6 = inlined_call_operand.<no memory space> [shape: f32[1,1], index: 6, kind: input, shape index: {}]
  %s7 = inlined_call_operand.hbm [shape: f32[16,128], index: 7, kind: output, shape index: {}]
  %s8 = sld [smem:[#allocation0]]
  $region50: #{tpu_custom_call.1} parent=0
    _
  %s10 = ssub.s32 1, %s8
  %s11 = scalar_select 0, %s10, %s8
  %v12 = vstv %s6
  %13 = vst [vmem:[#allocation2] sm:$0x1] %v12
  $region1: #{tpu_custom_call.1} parent=0
    #allocation3 [shape = 'u8[4096]{0}', space=vmem, size = 0x1000, scoped, tag = 'input window, operand 0, single buffered']
    #allocation4 [shape = 's32[1]{0}', space=sflag, size = 0x4, scoped, tag = 'scoped memory for tpu_custom_call.1']
    #allocation5 [shape = 's32[1]{0}', space=sflag, size = 0x4, scoped, tag = 'scoped memory for tpu_custom_call.1']
    #allocation6 [shape = 'u8[16384]{0}', space=vmem, size = 0x4000, scoped, tag = 'input window, operand 1, single buffered']
    #allocation7 [shape = 's32[1]{0}', space=sflag, size = 0x4, scoped, tag = 'scoped memory for tpu_custom_call.1']
    #allocation8 [shape = 'u8[131072]{0}', space=vmem, size = 0x20000, scoped, tag = 'input window, operand 3, single buffered']
    #allocation9 [shape = 'u8[8192]{0}', space=vmem, size = 0x2000, scoped, tag = 'output window, operand 0, single buffered']
    %14 = vsyncpa [#allocation4], 0
    %15 = vsyncpa [#allocation7], 0
    %16 = vsyncpa [#allocation5], 0
    // Predicated region
    $region2: #{tpu_custom_call.1} parent=1 // pred_check
      _
    $region3: #{tpu_custom_call.1} parent=1 // pred_check_branch
      %18 = sbr.rel (0) target = $region5
    $region4: #{tpu_custom_call.1} parent=1 // pred_region
      %20 = vsyncadd [#allocation4], 0
      %s21 = sshll.u32 %s0, 4
      %s22 = int_to_ptr.hbm [resolvable:$true] %s21
      %s23 = sshll.u32 [#allocation3], 4
      %s24 = int_to_ptr.vmem [resolvable:$true] %s23
      %29 = dma.hbm_to_vmem [thread:$0]  %s22, 128, %s24, [#allocation4], 64, 64, 4
    $region5: #{tpu_custom_call.1} parent=1 // pred_fallthru
      _
    // Predicated region
    $region6: #{tpu_custom_call.1} parent=1 // pred_check
      _
    $region7: #{tpu_custom_call.1} parent=1 // pred_check_branch
      %31 = sbr.rel (0) target = $region9
    $region8: #{tpu_custom_call.1} parent=1 // pred_region
      %33 = vsyncadd [#allocation7], 0
      %s34 = sshll.u32 %s1, 4
      %s35 = int_to_ptr.hbm [resolvable:$true] %s34
      %s36 = sshll.u32 [#allocation6], 4
      %s37 = int_to_ptr.vmem [resolvable:$true] %s36
      %42 = dma.hbm_to_vmem [thread:$0]  %s35, 512, %s37, [#allocation7], 128, 128, 8
    $region9: #{tpu_custom_call.1} parent=1 // pred_fallthru
      _
    // Predicated region
    $region10: #{tpu_custom_call.1} parent=1 // pred_check
      _
    $region11: #{tpu_custom_call.1} parent=1 // pred_check_branch
      %44 = sbr.rel (0) target = $region13
    $region12: #{tpu_custom_call.1} parent=1 // pred_region
      _
    $region13: #{tpu_custom_call.1} parent=1 // pred_fallthru
      _
    // Predicated region
    $region14: #{tpu_custom_call.1} parent=1 // pred_check
      _
    $region15: #{tpu_custom_call.1} parent=1 // pred_check_branch
      %46 = sbr.rel (0) target = $region17
    $region16: #{tpu_custom_call.1} parent=1 // pred_region
      %48 = vsyncadd [#allocation7], 0
      %s49 = sshll.u32 %s3, 4
      %s50 = int_to_ptr.hbm [resolvable:$true] %s49
      %s51 = sshll.u32 [#allocation8], 4
      %s52 = int_to_ptr.vmem [resolvable:$true] %s51
      %57 = dma.hbm_to_vmem [thread:$0]  %s50, 4096, %s52, [#allocation7], 128, 128, 8
    $region17: #{tpu_custom_call.1} parent=1 // pred_fallthru
      _
    // Predicated region
    $region18: #{tpu_custom_call.1} parent=1 // pred_check
      _
    $region19: #{tpu_custom_call.1} parent=1 // pred_check_branch
      %59 = sbr.rel (0) target = $region21
    $region20: #{tpu_custom_call.1} parent=1 // pred_region
      _
    $region21: #{tpu_custom_call.1} parent=1 // pred_fallthru
      _
    // Predicated region
    $region22: #{tpu_custom_call.1} parent=1 // pred_check
      _
    $region23: #{tpu_custom_call.1} parent=1 // pred_check_branch
      %61 = sbr.rel (0) target = $region25
    $region24: #{tpu_custom_call.1} parent=1 // pred_region
      _
    $region25: #{tpu_custom_call.1} parent=1 // pred_fallthru
      _
    // Predicated region
    $region26: #{tpu_custom_call.1} parent=1 // pred_check
      _
    $region27: #{tpu_custom_call.1} parent=1 // pred_check_branch
      %63 = sbr.rel (0) target = $region29
    $region28: #{tpu_custom_call.1} parent=1 // pred_region
      _
    $region29: #{tpu_custom_call.1} parent=1 // pred_fallthru
      _
    // Predicated region
    $region30: #{tpu_custom_call.1} parent=1 // pred_check
      _
    $region31: #{tpu_custom_call.1} parent=1 // pred_check_branch
      %65 = sbr.rel (0) target = $region33
    $region32: #{tpu_custom_call.1} parent=1 // pred_region
      %67 = dma.done [#allocation4], 128
    $region33: #{tpu_custom_call.1} parent=1 // pred_fallthru
      _
    // Predicated region
    $region34: #{tpu_custom_call.1} parent=1 // pred_check
      _
    $region35: #{tpu_custom_call.1} parent=1 // pred_check_branch
      %69 = sbr.rel (0) target = $region37
    $region36: #{tpu_custom_call.1} parent=1 // pred_region
      %71 = dma.done [#allocation7], 512
    $region37: #{tpu_custom_call.1} parent=1 // pred_fallthru
      _
    // Predicated region
    $region38: #{tpu_custom_call.1} parent=1 // pred_check
      _
    $region39: #{tpu_custom_call.1} parent=1 // pred_check_branch
      %73 = sbr.rel (0) target = $region41
    $region40: #{tpu_custom_call.1} parent=1 // pred_region
      %75 = dma.done [#allocation7], 4096
    $region41: #{tpu_custom_call.1} parent=1 // pred_fallthru
      _
    %v77 = vld [vmem:[#allocation3] sm:$0xf]
    %v78 = vld [vmem:[#allocation3 + $0x4] sm:$0xf]
    %v79 = vld [vmem:[#allocation6] sm:$0xff]
    %v80 = vld [vmem:[#allocation6 + $0x8] sm:$0xff]
    %v81 = vld [vmem:[#allocation6 + $0x10] sm:$0xff]
    %v82 = vld [vmem:[#allocation6 + $0x18] sm:$0xff]
    %v83 = vld [vmem:[%s2] sm:$0x3]
    %v85 = vperm.slane %v83, 0
    %v86 = vperm.slane %v83, 1
    %v91 = vunpack.c.l.b16 %v77
    %v92 = vunpack.c.l.b16 %v78
    %v93 = vpack.c.b16 %v92, %v91
    %v98 = vunpack.c.l.b16 %v79
    %v99 = vunpack.c.h.b16 %v79
    %v100 = vunpack.c.l.b16 %v80
    %v101 = vunpack.c.h.b16 %v80
    %v102 = vunpack.c.l.b16 %v81
    %v103 = vunpack.c.h.b16 %v81
    %v104 = vunpack.c.l.b16 %v82
    %v105 = vunpack.c.h.b16 %v82
    %v106 = vpack.c.b16 %v100, %v98
    %v107 = vpack.c.b16 %v101, %v99
    %v108 = vpack.c.b16 %v104, %v102
    %v109 = vpack.c.b16 %v105, %v103
    %vm114 = vcmask 261120
    %v116 = vsel %vm114, %v93, 0
    %118 = vmatpush.bf16.msra.mxu0 0
    %119 = vmatpush.bf16.msra.mxu0 0
    %120 = vmatpush.bf16.msra.mxu0 0
    %121 = vmatpush.bf16.msra.mxu0 0
    %122 = vmatpush.bf16.msra.mxu0 0
    %123 = vmatpush.bf16.msra.mxu0 0
    %124 = vmatpush.bf16.msra.mxu0 %v108
    %125 = vmatpush.bf16.msra.mxu0 %v106
    %126 = vmatmul.bf16.gmra.mxu0 %v116
    %v127 = vpop.f32.mrf.mxu0
    %v128 = vadd.f32 %v85, %v127
    %v129 = vpop.f32.mrf.mxu0
    %v130 = vadd.f32 %v85, %v129
    %131 = vdwg.mxu0
    %132 = vmatpush.bf16.msra.mxu0 0
    %133 = vmatpush.bf16.msra.mxu0 0
    %134 = vmatpush.bf16.msra.mxu0 0
    %135 = vmatpush.bf16.msra.mxu0 0
    %136 = vmatpush.bf16.msra.mxu0 0
    %137 = vmatpush.bf16.msra.mxu0 0
    %138 = vmatpush.bf16.msra.mxu0 %v109
    %139 = vmatpush.bf16.msra.mxu0 %v107
    %140 = vmatmul.bf16.gmra.mxu0 %v116
    %v141 = vpop.f32.mrf.mxu0
    %v142 = vadd.f32 %v86, %v141
    %v143 = vpop.f32.mrf.mxu0
    %v144 = vadd.f32 %v86, %v143
    %145 = vdwg.mxu0
    %v146 = vmax.f32 %v128, 0.0
    %v147 = vmax.f32 %v142, 0.0
    %v148 = vmax.f32 %v130, 0.0
    %v149 = vmax.f32 %v144, 0.0
    %v150 = vpack.c.bf16 %v148, %v146
    %v151 = vpack.c.bf16 %v149, %v147
    %v152 = vld [vmem:[#allocation8] sm:$0xff]
    %v153 = vld [vmem:[#allocation8 + $0x8] sm:$0xff]
    %v154 = vld [vmem:[#allocation8 + $0x10] sm:$0xff]
    %v155 = vld [vmem:[#allocation8 + $0x18] sm:$0xff]
    %v156 = vld [vmem:[#allocation8 + $0x20] sm:$0xff]
    %v157 = vld [vmem:[#allocation8 + $0x28] sm:$0xff]
    %v158 = vld [vmem:[#allocation8 + $0x30] sm:$0xff]
    %v159 = vld [vmem:[#allocation8 + $0x38] sm:$0xff]
    %v160 = vld [vmem:[#allocation8 + $0x40] sm:$0xff]
    %v161 = vld [vmem:[#allocation8 + $0x48] sm:$0xff]
    %v162 = vld [vmem:[#allocation8 + $0x50] sm:$0xff]
    %v163 = vld [vmem:[#allocation8 + $0x58] sm:$0xff]
    %v164 = vld [vmem:[#allocation8 + $0x60] sm:$0xff]
    %v165 = vld [vmem:[#allocation8 + $0x68] sm:$0xff]
    %v166 = vld [vmem:[#allocation8 + $0x70] sm:$0xff]
    %v167 = vld [vmem:[#allocation8 + $0x78] sm:$0xff]
    %v168 = vld [vmem:[#allocation8 + $0x80] sm:$0xff]
    %v169 = vld [vmem:[#allocation8 + $0x88] sm:$0xff]
    %v170 = vld [vmem:[#allocation8 + $0x90] sm:$0xff]
    %v171 = vld [vmem:[#allocation8 + $0x98] sm:$0xff]
    %v172 = vld [vmem:[#allocation8 + $0xa0] sm:$0xff]
    %v173 = vld [vmem:[#allocation8 + $0xa8] sm:$0xff]
    %v174 = vld [vmem:[#allocation8 + $0xb0] sm:$0xff]
    %v175 = vld [vmem:[#allocation8 + $0xb8] sm:$0xff]
    %v176 = vld [vmem:[#allocation8 + $0xc0] sm:$0xff]
    %v177 = vld [vmem:[#allocation8 + $0xc8] sm:$0xff]
    %v178 = vld [vmem:[#allocation8 + $0xd0] sm:$0xff]
    %v179 = vld [vmem:[#allocation8 + $0xd8] sm:$0xff]
    %v180 = vld [vmem:[#allocation8 + $0xe0] sm:$0xff]
    %v181 = vld [vmem:[#allocation8 + $0xe8] sm:$0xff]
    %v182 = vld [vmem:[#allocation8 + $0xf0] sm:$0xff]
    %v183 = vld [vmem:[#allocation8 + $0xf8] sm:$0xff]
    %v184 = vld [vmem:[%s4] sm:$0x3]
    %v186 = vperm.slane %v184, 0
    %v187 = vperm.slane %v184, 1
    %v222 = vunpack.c.l.b16 %v152
    %v223 = vunpack.c.h.b16 %v152
    %v224 = vunpack.c.l.b16 %v153
    %v225 = vunpack.c.h.b16 %v153
    %v226 = vunpack.c.l.b16 %v154
    %v227 = vunpack.c.h.b16 %v154
    %v228 = vunpack.c.l.b16 %v155
    %v229 = vunpack.c.h.b16 %v155
    %v230 = vunpack.c.l.b16 %v156
    %v231 = vunpack.c.h.b16 %v156
    %v232 = vunpack.c.l.b16 %v157
    %v233 = vunpack.c.h.b16 %v157
    %v234 = vunpack.c.l.b16 %v158
    %v235 = vunpack.c.h.b16 %v158
    %v236 = vunpack.c.l.b16 %v159
    %v237 = vunpack.c.h.b16 %v159
    %v238 = vunpack.c.l.b16 %v160
    %v239 = vunpack.c.h.b16 %v160
    %v240 = vunpack.c.l.b16 %v161
    %v241 = vunpack.c.h.b16 %v161
    %v242 = vunpack.c.l.b16 %v162
    %v243 = vunpack.c.h.b16 %v162
    %v244 = vunpack.c.l.b16 %v163
    %v245 = vunpack.c.h.b16 %v163
    %v246 = vunpack.c.l.b16 %v164
    %v247 = vunpack.c.h.b16 %v164
    %v248 = vunpack.c.l.b16 %v165
    %v249 = vunpack.c.h.b16 %v165
    %v250 = vunpack.c.l.b16 %v166
    %v251 = vunpack.c.h.b16 %v166
    %v252 = vunpack.c.l.b16 %v167
    %v253 = vunpack.c.h.b16 %v167
    %v254 = vunpack.c.l.b16 %v168
    %v255 = vunpack.c.h.b16 %v168
    %v256 = vunpack.c.l.b16 %v169
    %v257 = vunpack.c.h.b16 %v169
    %v258 = vunpack.c.l.b16 %v170
    %v259 = vunpack.c.h.b16 %v170
    %v260 = vunpack.c.l.b16 %v171
    %v261 = vunpack.c.h.b16 %v171
    %v262 = vunpack.c.l.b16 %v172
    %v263 = vunpack.c.h.b16 %v172
    %v264 = vunpack.c.l.b16 %v173
    %v265 = vunpack.c.h.b16 %v173
    %v266 = vunpack.c.l.b16 %v174
    %v267 = vunpack.c.h.b16 %v174
    %v268 = vunpack.c.l.b16 %v175
    %v269 = vunpack.c.h.b16 %v175
    %v270 = vunpack.c.l.b16 %v176
    %v271 = vunpack.c.h.b16 %v176
    %v272 = vunpack.c.l.b16 %v177
    %v273 = vunpack.c.h.b16 %v177
    %v274 = vunpack.c.l.b16 %v178
    %v275 = vunpack.c.h.b16 %v178
    %v276 = vunpack.c.l.b16 %v179
    %v277 = vunpack.c.h.b16 %v179
    %v278 = vunpack.c.l.b16 %v180
    %v279 = vunpack.c.h.b16 %v180
    %v280 = vunpack.c.l.b16 %v181
    %v281 = vunpack.c.h.b16 %v181
    %v282 = vunpack.c.l.b16 %v182
    %v283 = vunpack.c.h.b16 %v182
    %v284 = vunpack.c.l.b16 %v183
    %v285 = vunpack.c.h.b16 %v183
    %v286 = vpack.c.b16 %v224, %v222
    %v287 = vpack.c.b16 %v225, %v223
    %v288 = vpack.c.b16 %v228, %v226
    %v289 = vpack.c.b16 %v229, %v227
    %v290 = vpack.c.b16 %v232, %v230
    %v291 = vpack.c.b16 %v233, %v231
    %v292 = vpack.c.b16 %v236, %v234
    %v293 = vpack.c.b16 %v237, %v235
    %v294 = vpack.c.b16 %v240, %v238
    %v295 = vpack.c.b16 %v241, %v239
    %v296 = vpack.c.b16 %v244, %v242
    %v297 = vpack.c.b16 %v245, %v243
    %v298 = vpack.c.b16 %v248, %v246
    %v299 = vpack.c.b16 %v249, %v247
    %v300 = vpack.c.b16 %v252, %v250
    %v301 = vpack.c.b16 %v253, %v251
    %v302 = vpack.c.b16 %v256, %v254
    %v303 = vpack.c.b16 %v257, %v255
    %v304 = vpack.c.b16 %v260, %v258
    %v305 = vpack.c.b16 %v261, %v259
    %v306 = vpack.c.b16 %v264, %v262
    %v307 = vpack.c.b16 %v265, %v263
    %v308 = vpack.c.b16 %v268, %v266
    %v309 = vpack.c.b16 %v269, %v267
    %v310 = vpack.c.b16 %v272, %v270
    %v311 = vpack.c.b16 %v273, %v271
    %v312 = vpack.c.b16 %v276, %v274
    %v313 = vpack.c.b16 %v277, %v275
    %v314 = vpack.c.b16 %v280, %v278
    %v315 = vpack.c.b16 %v281, %v279
    %v316 = vpack.c.b16 %v284, %v282
    %v317 = vpack.c.b16 %v285, %v283
    %350 = vmatpush.bf16.msra.mxu0 %v300
    %351 = vmatpush.bf16.msra.mxu0 %v298
    %352 = vmatpush.bf16.msra.mxu0 %v296
    %353 = vmatpush.bf16.msra.mxu0 %v294
    %354 = vmatpush.bf16.msra.mxu0 %v292
    %355 = vmatpush.bf16.msra.mxu0 %v290
    %356 = vmatpush.bf16.msra.mxu0 %v288
    %357 = vmatpush.bf16.msra.mxu0 %v286
    %358 = vmatmul.bf16.gmra.mxu0 %v150
    %v359 = vpop.f32.mrf.mxu0
    %v360 = vadd.f32 %v186, %v359
    %v361 = vpop.f32.mrf.mxu0
    %v362 = vadd.f32 %v186, %v361
    %363 = vdwg.mxu0
    %364 = vmatpush.bf16.msra.mxu0 %v316
    %365 = vmatpush.bf16.msra.mxu0 %v314
    %366 = vmatpush.bf16.msra.mxu0 %v312
    %367 = vmatpush.bf16.msra.mxu0 %v310
    %368 = vmatpush.bf16.msra.mxu0 %v308
    %369 = vmatpush.bf16.msra.mxu0 %v306
    %370 = vmatpush.bf16.msra.mxu0 %v304
    %371 = vmatpush.bf16.msra.mxu0 %v302
    %372 = vmatmul.bf16.gmra.mxu0 %v151
    %v373 = vpop.f32.mrf.mxu0
    %v374 = vadd.f32 %v360, %v373
    %v375 = vpop.f32.mrf.mxu0
    %v376 = vadd.f32 %v362, %v375
    %377 = vdwg.mxu0
    %378 = vmatpush.bf16.msra.mxu0 %v301
    %379 = vmatpush.bf16.msra.mxu0 %v299
    %380 = vmatpush.bf16.msra.mxu0 %v297
    %381 = vmatpush.bf16.msra.mxu0 %v295
    %382 = vmatpush.bf16.msra.mxu0 %v293
    %383 = vmatpush.bf16.msra.mxu0 %v291
    %384 = vmatpush.bf16.msra.mxu0 %v289
    %385 = vmatpush.bf16.msra.mxu0 %v287
    %386 = vmatmul.bf16.gmra.mxu0 %v150
    %v387 = vpop.f32.mrf.mxu0
    %v388 = vadd.f32 %v187, %v387
    %v389 = vpop.f32.mrf.mxu0
    %v390 = vadd.f32 %v187, %v389
    %391 = vdwg.mxu0
    %392 = vmatpush.bf16.msra.mxu0 %v317
    %393 = vmatpush.bf16.msra.mxu0 %v315
    %394 = vmatpush.bf16.msra.mxu0 %v313
    %395 = vmatpush.bf16.msra.mxu0 %v311
    %396 = vmatpush.bf16.msra.mxu0 %v309
    %397 = vmatpush.bf16.msra.mxu0 %v307
    %398 = vmatpush.bf16.msra.mxu0 %v305
    %399 = vmatpush.bf16.msra.mxu0 %v303
    %400 = vmatmul.bf16.gmra.mxu0 %v151
    %v401 = vpop.f32.mrf.mxu0
    %v402 = vadd.f32 %v388, %v401
    %v403 = vpop.f32.mrf.mxu0
    %v404 = vadd.f32 %v390, %v403
    %405 = vdwg.mxu0
    %v406 = vmax.f32 %v374, 0.0
    %v407 = vmax.f32 %v402, 0.0
    %v408 = vmax.f32 %v376, 0.0
    %v409 = vmax.f32 %v404, 0.0
    %v410 = vld [vmem:[%s5] sm:$0x3]
    %v412 = vperm.slane %v410, 0
    %v413 = vperm.slane %v410, 1
    %v416 = vmul.f32 %v406, %v412
    %v417 = vmul.f32 %v407, %v413
    %v418 = vmul.f32 %v408, %v412
    %v419 = vmul.f32 %v409, %v413
    %v420 = vadd.f32 %v416, %v417
    %421 = vadd.xlane.f32.xlu0 %v420
    %v422 = vpop.xlane.xlu0 %421
    %v423 = vadd.f32 %v418, %v419
    %424 = vadd.xlane.f32.xlu0 %v423
    %v425 = vpop.xlane.xlu0 %424
    %v426 = vld [vmem:[#allocation2] sm:$0x1]
    %v428 = vperm.slane %v426, 0
    %v430 = vadd.f32 %v422, %v428
    %v431 = vadd.f32 %v425, %v428
    %433 = vset.pattern.permute.xlu0 0
    %434 = vperm.xlu0 %433, %v430
    %v435 = vpop.permute.xlu0 %434
    %438 = vset.pattern.permute.xlu0 0
    %439 = vperm.xlu0 %438, %v431
    %v440 = vpop.permute.xlu0 %439
    %442 = vst [vmem:[#allocation9] sm:$0xff] %v435
    %443 = vst [vmem:[#allocation9 + $0x8] sm:$0xff] %v440
    // Predicated region
    $region42: #{tpu_custom_call.1} parent=1 // pred_check
      _
    $region43: #{tpu_custom_call.1} parent=1 // pred_check_branch
      %445 = sbr.rel (0) target = $region45
    $region44: #{tpu_custom_call.1} parent=1 // pred_region
      %447 = vsyncadd [#allocation5], 0
      %s448 = sshll.u32 [#allocation9], 4
      %s449 = int_to_ptr.vmem [resolvable:$true] %s448
      %s450 = sshll.u32 %s7, 4
      %s451 = int_to_ptr.hbm [resolvable:$true] %s450
      %456 = dma.vmem_to_hbm [thread:$0]  %s449, 256, %s451, [#allocation5], 128, 128, 8
    $region45: #{tpu_custom_call.1} parent=1 // pred_fallthru
      _
    // Predicated region
    $region46: #{tpu_custom_call.1} parent=1 // pred_check
      _
    $region47: #{tpu_custom_call.1} parent=1 // pred_check_branch
      %458 = sbr.rel (0) target = $region49
    $region48: #{tpu_custom_call.1} parent=1 // pred_region
      %460 = dma.done [#allocation5], 256
    $region49: #{tpu_custom_call.1} parent=1 // pred_fallthru
      _
    %461 = vsyncpa [#allocation4], 1
    %462 = vsyncpa [#allocation7], 1
    %463 = vsyncpa [#allocation5], 1

</llo_original>
